<compile_context>
chip_gen: v5e
topology: v5e:2x2
jax: 0.10.0
libtpu: 0.0.40
codegen_flags: <defaults>
</compile_context>

<pallas_src>
import functools

import jax
import jax.numpy as jnp
from jax.experimental import pallas as pl
from jax.experimental.pallas import tpu as pltpu


def mask_vector_kernel(w_ref, g_ref, x_ref, out_ref, *, hop, dg, dx, lpad):
    """w_ref: (H,1)  g_ref: (NUM_HOPS,Dg)  x_ref: (NUM_HOPS,Dx)  out_ref: (2,Lpad)."""
    h = len(hop)
    # sigmoid on the EUP; fold the 1/H mean factor into the weights.
    sig = jax.nn.sigmoid(w_ref[...]) * (1.0 / float(h))                  # (H, 1)

    # Static gather of the hop rows (hop is a Python tuple -> static slices),
    # then a single (H, D) broadcast-multiply + small sublane reduce instead of
    # H separate single-row lane broadcasts.
    g_rows = jnp.concatenate([g_ref[j:j + 1, :] for j in hop], axis=0)   # (H, Dg)
    x_rows = jnp.concatenate([x_ref[j:j + 1, :] for j in hop], axis=0)   # (H, Dx)

    acc_g = jnp.sum(sig * g_rows, axis=0, keepdims=True)                 # (1, Dg)
    acc_x = jnp.sum(sig * x_rows, axis=0, keepdims=True)                 # (1, Dx)

    # Zero-pad to the lane-dense slab width in registers and emit ONE unmasked
    # (2, lpad) store.  Pad lanes are written with real zeros, so nothing
    # downstream can ever observe garbage.
    if lpad > dg:
        acc_g = jnp.concatenate(
            [acc_g, jnp.zeros((1, lpad - dg), acc_g.dtype)], axis=-1)
    if lpad > dx:
        acc_x = jnp.concatenate(
            [acc_x, jnp.zeros((1, lpad - dx), acc_x.dtype)], axis=-1)
    out_ref[...] = jnp.concatenate([acc_g, acc_x], axis=0)               # (2, lpad)


def mask_vector_forward(weight, gcn_features, rawX, hop):
    """weight: (H,1); gcn_features: (NUM_HOPS, Dg); rawX: (NUM_HOPS, Dx); hop: static ints."""
    hop = tuple(int(i) for i in hop)
    h = len(hop)
    nh_g, dg = gcn_features.shape
    nh_x, dx = rawX.shape
    lpad = 128 * pl.cdiv(max(dg, dx), 128)     # lane-dense output width (>=128)

    # .detach() -> stop_gradient (identity at runtime); .cuda() is a no-op here.
    g = jax.lax.stop_gradient(gcn_features)
    x = jax.lax.stop_gradient(rawX)

    kernel = functools.partial(mask_vector_kernel, hop=hop, dg=dg, dx=dx, lpad=lpad)

    packed = pl.pallas_call(
        kernel,
        out_shape=jax.ShapeDtypeStruct((2, lpad), jnp.float32),
        # Single grid point; every operand is one full-array VMEM block.
        in_specs=[
            pl.BlockSpec((h, 1), lambda: (0, 0)),
            pl.BlockSpec((nh_g, dg), lambda: (0, 0)),
            pl.BlockSpec((nh_x, dx), lambda: (0, 0)),
        ],
        out_specs=pl.BlockSpec((2, lpad), lambda: (0, 0)),
        compiler_params=pltpu.CompilerParams(dimension_semantics=()),
        cost_estimate=pl.CostEstimate(
            flops=2 * h * (dg + dx) + 2 * h,
            transcendentals=h,
            bytes_accessed=4 * (h + nh_g * dg + nh_x * dx + 2 * lpad),
        ),
    )(weight, g, x)

    out = packed[0, :dg].astype(gcn_features.dtype)
    proxy = packed[1, :dx].astype(rawX.dtype)
    return out, proxy


if __name__ == "__main__":
    key = jax.random.PRNGKey(0)
    k1, k2 = jax.random.split(key)

    NUM_HOPS, Dg, Dx = 6, 32, 16
    hop = (0, 2, 4)                       # self.hop (list of hop indices), H = 3

    gcn_features = jax.random.normal(k1, (NUM_HOPS, Dg), dtype=jnp.float32)
    rawX = jax.random.normal(k2, (NUM_HOPS, Dx), dtype=jnp.float32)
    # __init__: torch.nn.Parameter(torch.ones(len(hop), 1))
    weight = jnp.ones((len(hop), 1), dtype=jnp.float32)

    out, proxy = mask_vector_forward(weight, gcn_features, rawX, hop)
    jax.block_until_ready((out, proxy))

    # Pure-JAX reference check.
    hop_idx = jnp.asarray(hop, dtype=jnp.int32)
    w_ref = jax.nn.sigmoid(weight)
    ref_out = jnp.mean(w_ref * gcn_features[hop_idx], axis=0)
    ref_proxy = jnp.mean(w_ref * rawX[hop_idx], axis=0)
    assert out.shape == (Dg,) and proxy.shape == (Dx,)
    assert jnp.allclose(out, ref_out, atol=1e-5, rtol=1e-5)
    assert jnp.allclose(proxy, ref_proxy, atol=1e-5, rtol=1e-5)

    print("KERNEL_OK")
</pallas_src>

<mosaic_0001>
module attributes {stable_mosaic.version = 11 : i64} {
  func.func @mask_vector_kernel(%arg0: memref<3x1xf32, #tpu.memory_space<vmem>>, %arg1: memref<6x32xf32, #tpu.memory_space<vmem>>, %arg2: memref<6x16xf32, #tpu.memory_space<vmem>>, %arg3: memref<2x128xf32, #tpu.memory_space<vmem>>) attributes {dimension_semantics = [], scalar_prefetch = 0 : i64, scratch_operands = 0 : i64, tpu.core_type = #tpu.core_type<tc>} {
    %c0 = arith.constant 0 : index
    %c0_0 = arith.constant 0 : index
    %0 = vector.load %arg0[%c0, %c0_0] : memref<3x1xf32, #tpu.memory_space<vmem>>, vector<3x1xf32>
    %1 = arith.negf %0 : vector<3x1xf32>
    %2 = math.exp %1 : vector<3x1xf32>
    %cst = arith.constant 1.000000e+00 : f32
    %3 = vector.broadcast %cst : f32 to vector<3x1xf32>
    %4 = arith.addf %3, %2 : vector<3x1xf32>
    %5 = arith.divf %3, %4 : vector<3x1xf32>
    %cst_1 = arith.constant 0.333333343 : f32
    %6 = vector.broadcast %cst_1 : f32 to vector<3x1xf32>
    %7 = arith.mulf %5, %6 : vector<3x1xf32>
    %c0_2 = arith.constant 0 : index
    %c0_3 = arith.constant 0 : index
    %8 = vector.load %arg1[%c0_2, %c0_3] : memref<6x32xf32, #tpu.memory_space<vmem>>, vector<1x32xf32>
    %c2 = arith.constant 2 : index
    %c0_4 = arith.constant 0 : index
    %9 = vector.load %arg1[%c2, %c0_4] : memref<6x32xf32, #tpu.memory_space<vmem>>, vector<1x32xf32>
    %c4 = arith.constant 4 : index
    %c0_5 = arith.constant 0 : index
    %10 = vector.load %arg1[%c4, %c0_5] : memref<6x32xf32, #tpu.memory_space<vmem>>, vector<1x32xf32>
    %11 = tpu.concatenate %8, %9, %10 in 0 : vector<1x32xf32>, vector<1x32xf32>, vector<1x32xf32> -> vector<3x32xf32>
    %c0_6 = arith.constant 0 : index
    %c0_7 = arith.constant 0 : index
    %12 = vector.load %arg2[%c0_6, %c0_7] : memref<6x16xf32, #tpu.memory_space<vmem>>, vector<1x16xf32>
    %c2_8 = arith.constant 2 : index
    %c0_9 = arith.constant 0 : index
    %13 = vector.load %arg2[%c2_8, %c0_9] : memref<6x16xf32, #tpu.memory_space<vmem>>, vector<1x16xf32>
    %c4_10 = arith.constant 4 : index
    %c0_11 = arith.constant 0 : index
    %14 = vector.load %arg2[%c4_10, %c0_11] : memref<6x16xf32, #tpu.memory_space<vmem>>, vector<1x16xf32>
    %15 = tpu.concatenate %12, %13, %14 in 0 : vector<1x16xf32>, vector<1x16xf32>, vector<1x16xf32> -> vector<3x16xf32>
    %16 = vector.broadcast %7 : vector<3x1xf32> to vector<3x32xf32>
    %17 = arith.mulf %16, %11 : vector<3x32xf32>
    %cst_12 = arith.constant dense<0.000000e+00> : vector<32xf32>
    %18 = vector.multi_reduction <add>, %17, %cst_12 [0] : vector<3x32xf32> to vector<32xf32>
    %19 = vector.shape_cast %18 : vector<32xf32> to vector<1x32xf32>
    %20 = vector.broadcast %7 : vector<3x1xf32> to vector<3x16xf32>
    %21 = arith.mulf %20, %15 : vector<3x16xf32>
    %cst_13 = arith.constant dense<0.000000e+00> : vector<16xf32>
    %22 = vector.multi_reduction <add>, %21, %cst_13 [0] : vector<3x16xf32> to vector<16xf32>
    %23 = vector.shape_cast %22 : vector<16xf32> to vector<1x16xf32>
    %cst_14 = arith.constant 0.000000e+00 : f32
    %24 = vector.broadcast %cst_14 : f32 to vector<1x96xf32>
    %25 = tpu.concatenate %19, %24 in 1 : vector<1x32xf32>, vector<1x96xf32> -> vector<1x128xf32>
    %cst_15 = arith.constant 0.000000e+00 : f32
    %26 = vector.broadcast %cst_15 : f32 to vector<1x112xf32>
    %27 = tpu.concatenate %23, %26 in 1 : vector<1x16xf32>, vector<1x112xf32> -> vector<1x128xf32>
    %28 = tpu.concatenate %25, %27 in 0 : vector<1x128xf32>, vector<1x128xf32> -> vector<2x128xf32>
    %c0_16 = arith.constant 0 : index
    %c0_17 = arith.constant 0 : index
    %29 = vector.load %arg3[%c0_16, %c0_17] : memref<2x128xf32, #tpu.memory_space<vmem>>, vector<2x128xf32>
    tpu.vector_store %arg3[%c0_16, %c0_17], %28 {strides = array<i32>} : memref<2x128xf32, #tpu.memory_space<vmem>>, vector<2x128xf32>,
    return
  }
}

</mosaic_0001>

<llo_original>
// kernel: tpu_custom_call.1
$region0: #{tpu_custom_call.1}
  #allocation0 [shape = 'u32[]', space=smem, size = 0x4, offset = 0x4, fixed_abs, tag = 'smem constant byte address 0x4 - core index']
  #allocation1 [shape = 'u32[72,128]{1,0:T(1,128)}', space=vmem, size = 0x9000, scoped, tag = 'internal scratch']
  %s0 = inlined_call_operand.vmem [shape: f32[3,1], index: 0, kind: input, shape index: {}]
  %s1 = inlined_call_operand.hbm [shape: f32[6,32], index: 1, kind: input, shape index: {}]
  %s2 = inlined_call_operand.hbm [shape: f32[6,16], index: 2, kind: input, shape index: {}]
  %s3 = inlined_call_operand.hbm [shape: f32[2,128], index: 3, kind: output, shape index: {}]
  %s4 = sld [smem:[#allocation0]]
  $region30: #{tpu_custom_call.1} parent=0
    _
  %s6 = ssub.s32 1, %s4
  %s7 = scalar_select 0, %s6, %s4
  $region1: #{tpu_custom_call.1} parent=0
    #allocation2 [shape = 'u8[4096]{0}', space=vmem, size = 0x1000, scoped, tag = 'input window, operand 1, single buffered']
    #allocation3 [shape = 's32[1]{0}', space=sflag, size = 0x4, scoped, tag = 'scoped memory for tpu_custom_call.1']
    #allocation4 [shape = 's32[1]{0}', space=sflag, size = 0x4, scoped, tag = 'scoped memory for tpu_custom_call.1']
    #allocation5 [shape = 'u8[4096]{0}', space=vmem, size = 0x1000, scoped, tag = 'input window, operand 2, single buffered']
    #allocation6 [shape = 's32[1]{0}', space=sflag, size = 0x4, scoped, tag = 'scoped memory for tpu_custom_call.1']
    #allocation7 [shape = 'u8[1024]{0}', space=vmem, size = 0x400, scoped, tag = 'output window, operand 0, single buffered']
    %8 = vsyncpa [#allocation3], 0
    %9 = vsyncpa [#allocation6], 0
    %10 = vsyncpa [#allocation4], 0
    // Predicated region
    $region2: #{tpu_custom_call.1} parent=1 // pred_check
      _
    $region3: #{tpu_custom_call.1} parent=1 // pred_check_branch
      %12 = sbr.rel (0) target = $region5
    $region4: #{tpu_custom_call.1} parent=1 // pred_region
      _
    $region5: #{tpu_custom_call.1} parent=1 // pred_fallthru
      _
    // Predicated region
    $region6: #{tpu_custom_call.1} parent=1 // pred_check
      _
    $region7: #{tpu_custom_call.1} parent=1 // pred_check_branch
      %14 = sbr.rel (0) target = $region9
    $region8: #{tpu_custom_call.1} parent=1 // pred_region
      %16 = vsyncadd [#allocation3], 0
      %s18 = sshll.u32 %s1, 4
      %s19 = int_to_ptr.hbm [resolvable:$true] %s18
      %s20 = sshll.u32 [#allocation2], 4
      %s21 = int_to_ptr.vmem [resolvable:$true] %s20
      %23 = dma.hbm_to_vmem [thread:$0]  %s19, 128, %s21, [#allocation3]
    $region9: #{tpu_custom_call.1} parent=1 // pred_fallthru
      _
    // Predicated region
    $region10: #{tpu_custom_call.1} parent=1 // pred_check
      _
    $region11: #{tpu_custom_call.1} parent=1 // pred_check_branch
      %25 = sbr.rel (0) target = $region13
    $region12: #{tpu_custom_call.1} parent=1 // pred_region
      %27 = vsyncadd [#allocation6], 0
      %s29 = sshll.u32 %s2, 4
      %s30 = int_to_ptr.hbm [resolvable:$true] %s29
      %s31 = sshll.u32 [#allocation5], 4
      %s32 = int_to_ptr.vmem [resolvable:$true] %s31
      %34 = dma.hbm_to_vmem [thread:$0]  %s30, 128, %s32, [#allocation6]
    $region13: #{tpu_custom_call.1} parent=1 // pred_fallthru
      _
    // Predicated region
    $region14: #{tpu_custom_call.1} parent=1 // pred_check
      _
    $region15: #{tpu_custom_call.1} parent=1 // pred_check_branch
      %36 = sbr.rel (0) target = $region17
    $region16: #{tpu_custom_call.1} parent=1 // pred_region
      %38 = dma.done [#allocation3], 128
    $region17: #{tpu_custom_call.1} parent=1 // pred_fallthru
      _
    // Predicated region
    $region18: #{tpu_custom_call.1} parent=1 // pred_check
      _
    $region19: #{tpu_custom_call.1} parent=1 // pred_check_branch
      %40 = sbr.rel (0) target = $region21
    $region20: #{tpu_custom_call.1} parent=1 // pred_region
      %42 = dma.done [#allocation6], 128
    $region21: #{tpu_custom_call.1} parent=1 // pred_fallthru
      _
    %v43 = vld [vmem:[%s0] sm:$0x7]
    %v44 = vxor.u32 %v43, 2147483648
    %v45 = vmul.f32 %v44, 1.442695
    %v46 = vpow.pop %v45
    %v47 = vadd.f32 %v46, 1.0
    %v48 = vrcp.pop %v47
    %v49 = vmul.f32 %v47, %v48
    %v50 = vsub.f32 1.0, %v49
    %v51 = vmul.f32 %v48, %v50
    %v52 = vadd.f32 %v48, %v51
    %vm53 = vweird.f32 %v47
    %vm54 = vweird.f32 %v48
    %vm55 = vmor %vm53, %vm54
    %v56 = vsel %vm55, %v48, %v52
    %v57 = vand.u32 2147483647, %v47
    %vm58 = vcmp.eq.f32.partialorder %v57, 8.507059e+37
    %v59 = vand.u32 %v47, 2147483648
    %v60 = vor.u32 1.1754944e-38, %v59
    %v61 = vsel %vm58, %v60, %v56
    %v62 = vmul.f32 1.0, %v61
    %v63 = vmul.f32 %v62, 0.33333334
    %v64 = vld [vmem:[#allocation2] sm:$0x1]
    %v65 = vld [vmem:[#allocation2 + $0x2] sm:$0x1]
    %v66 = vld [vmem:[#allocation2 + $0x4] sm:$0x1]
    %v68 = vrot.slane %v65, 7
    %v71 = vrot.slane %v66, 6
    %vm73 = vcmask 1040384
    %v74 = vsel %vm73, %v64, %v68
    %vm75 = vcmask 1041408
    %v76 = vsel %vm75, %v74, %v71
    %v77 = vld [vmem:[#allocation5] sm:$0x1]
    %v78 = vld [vmem:[#allocation5 + $0x2] sm:$0x1]
    %v79 = vld [vmem:[#allocation5 + $0x4] sm:$0x1]
    %v81 = vrot.slane %v78, 7
    %v84 = vrot.slane %v79, 6
    %v86 = vsel %vm73, %v77, %v81
    %v87 = vsel %vm75, %v86, %v84
    %89 = vset.pattern.permute.xlu0 0
    %90 = vperm.xlu0 %89, %v63
    %v91 = vpop.permute.xlu0 %90
    %v93 = vmul.f32 %v91, %v76
    %vm94 = vcmask 256000
    %v95 = vsel %vm94, %v93, 0.0
    %v96 = vrot.slane %v95, 4
    %v97 = vadd.f32 %v95, %v96
    %v98 = vrot.slane %v97, 2
    %v99 = vadd.f32 %v97, %v98
    %v100 = vrot.slane %v99, 1
    %v101 = vadd.f32 %v99, %v100
    %v102 = vmul.f32 %v91, %v87
    %vm103 = vcmask 124928
    %v104 = vsel %vm103, %v102, 0.0
    %v105 = vrot.slane %v104, 4
    %v106 = vadd.f32 %v104, %v105
    %v107 = vrot.slane %v106, 2
    %v108 = vadd.f32 %v106, %v107
    %v109 = vrot.slane %v108, 1
    %v110 = vadd.f32 %v108, %v109
    %vm111 = vcmask 261120
    %v112 = vsel %vm111, %v101, 0.0
    %vm113 = vcmask 130048
    %v114 = vsel %vm113, %v110, 0.0
    %v116 = vrot.slane %v114, 7
    %v118 = vsel %vm73, %v112, %v116
    %119 = vst [vmem:[#allocation7] sm:$0x3] %v118
    // Predicated region
    $region22: #{tpu_custom_call.1} parent=1 // pred_check
      _
    $region23: #{tpu_custom_call.1} parent=1 // pred_check_branch
      %121 = sbr.rel (0) target = $region25
    $region24: #{tpu_custom_call.1} parent=1 // pred_region
      %123 = vsyncadd [#allocation4], 0
      %s125 = sshll.u32 [#allocation7], 4
      %s126 = int_to_ptr.vmem [resolvable:$true] %s125
      %s127 = sshll.u32 %s3, 4
      %s128 = int_to_ptr.hbm [resolvable:$true] %s127
      %130 = dma.vmem_to_hbm [thread:$0]  %s126, 32, %s128, [#allocation4]
    $region25: #{tpu_custom_call.1} parent=1 // pred_fallthru
      _
    // Predicated region
    $region26: #{tpu_custom_call.1} parent=1 // pred_check
      _
    $region27: #{tpu_custom_call.1} parent=1 // pred_check_branch
      %132 = sbr.rel (0) target = $region29
    $region28: #{tpu_custom_call.1} parent=1 // pred_region
      %134 = dma.done [#allocation4], 32
    $region29: #{tpu_custom_call.1} parent=1 // pred_fallthru
      _
    %135 = vsyncpa [#allocation3], 1
    %136 = vsyncpa [#allocation6], 1
    %137 = vsyncpa [#allocation4], 1

</llo_original>
